<compile_context>
chip_gen: v6e
topology: v6e:2x2x1
jax: 0.10.0
libtpu: 0.0.40
codegen_flags: <defaults>
</compile_context>

<pallas_src>
import functools

import jax
import jax.numpy as jnp
from jax.experimental import pallas as pl
from jax.experimental.pallas import tpu as pltpu


def _round_up(x, m):
    return (x + m - 1) // m * m


def gru4rec_kernel(gir_ref, giz_ref, gin_ref, h_ref,
                   whr_ref, whz_ref, whn_ref,
                   bhr_ref, bhz_ref, bhn_ref,
                   who_ref, bho_ref,
                   logit_ref, hnew_ref):
    # --- GRU cell: run once; hnew block is resident across the O grid axis ---
    @pl.when(pl.program_id(0) == 0)
    def _():
        h = h_ref[...]                                   # (Bp, Hp) f32
        h_bf = h.astype(jnp.bfloat16)
        h_r = jnp.dot(h_bf, whr_ref[...], preferred_element_type=jnp.float32) + bhr_ref[...]
        h_z = jnp.dot(h_bf, whz_ref[...], preferred_element_type=jnp.float32) + bhz_ref[...]
        h_n = jnp.dot(h_bf, whn_ref[...], preferred_element_type=jnp.float32) + bhn_ref[...]
        # PyTorch nn.GRU equations (gate order [r | z | n]); elementwise math in f32.
        r = jax.nn.sigmoid(gir_ref[...] + h_r)
        z = jax.nn.sigmoid(giz_ref[...] + h_z)
        n = jnp.tanh(gin_ref[...] + r * h_n)
        hnew_ref[...] = (1.0 - z) * n + z * h            # (Bp, Hp)

    # --- h2o linear for this tile of TN output items + final tanh ---
    h_new_bf = hnew_ref[...].astype(jnp.bfloat16)
    logit_ref[...] = jnp.tanh(
        jnp.dot(h_new_bf, who_ref[...], preferred_element_type=jnp.float32)
        + bho_ref[...]
    )


@functools.partial(jax.jit, static_argnames=("output_size", "block_n"))
def gru4rec_forward(item_idx, hidden, params, *, output_size, block_n):
    """item_idx: (B,) int32; hidden: (1, B, H) f32 -> (logit (B,O), hidden (1,B,H))."""
    B = item_idx.shape[0]
    H = hidden.shape[-1]
    Hp = params["whh_r"].shape[0]
    Op = params["who_t"].shape[1]
    TN = block_n
    Bp = _round_up(max(B, 8), 8)

    # One-hot encode + input matmul == row gather of W_ih^T (eval mode).
    # TODO(synk): dropout_input / dropout_hidden apply only in training mode; omitted (eval).
    gi = jnp.take(params["wih3"], item_idx, axis=0) + params["bih3"][None]   # (B, 3, Hp)
    pad_b = lambda a: jnp.pad(a, ((0, Bp - B), (0, 0)))
    gi_r = pad_b(gi[:, 0, :])
    gi_z = pad_b(gi[:, 1, :])
    gi_n = pad_b(gi[:, 2, :])
    h0 = jnp.pad(hidden[0], ((0, Bp - B), (0, Hp - H)))                       # (Bp, Hp)

    grid = (Op // TN,)
    res2 = lambda shape: pl.BlockSpec(shape, lambda j: (0, 0))   # resident block

    cost = pl.CostEstimate(
        flops=2 * Bp * Hp * (3 * Hp + Op),
        transcendentals=Bp * (3 * Hp + Op),
        bytes_accessed=(3 * Hp * Hp + Hp * Op) * 2               # bf16 weights
        + (3 * Hp + Op) * 4                                      # biases
        + (4 * Bp * Hp + Bp * Op + Bp * Hp) * 4,                 # activations in/out
    )

    logit_p, hnew_p = pl.pallas_call(
        gru4rec_kernel,
        out_shape=(
            jax.ShapeDtypeStruct((Bp, Op), jnp.float32),
            jax.ShapeDtypeStruct((Bp, Hp), jnp.float32),
        ),
        grid_spec=pltpu.PrefetchScalarGridSpec(
            num_scalar_prefetch=0,
            grid=grid,
            in_specs=[
                res2((Bp, Hp)), res2((Bp, Hp)), res2((Bp, Hp)),   # gi_r, gi_z, gi_n
                res2((Bp, Hp)),                                   # h0
                res2((Hp, Hp)), res2((Hp, Hp)), res2((Hp, Hp)),   # whh r/z/n (bf16)
                res2((1, Hp)), res2((1, Hp)), res2((1, Hp)),      # bhh r/z/n
                pl.BlockSpec((Hp, TN), lambda j: (0, j)),         # who_t tile (bf16)
                pl.BlockSpec((1, TN), lambda j: (0, j)),          # bho tile
            ],
            out_specs=(
                pl.BlockSpec((Bp, TN), lambda j: (0, j)),         # logit tile
                pl.BlockSpec((Bp, Hp), lambda j: (0, 0)),         # h_new (resident)
            ),
        ),
        compiler_params=pltpu.CompilerParams(
            # O axis must be "arbitrary": the GRU cell runs only at j==0 and later
            # tiles read the resident h_new block, so tiles must execute in order
            # on one core. (For v7x megacore, shard O at the XLA level instead.)
            dimension_semantics=("arbitrary",),
            vmem_limit_bytes=64 * 1024 * 1024,
        ),
        cost_estimate=cost,
    )(gi_r, gi_z, gi_n, h0,
      params["whh_r"], params["whh_z"], params["whh_n"],
      params["bhh_r"], params["bhh_z"], params["bhh_n"],
      params["who_t"], params["bho"])

    logit = logit_p[:B, :output_size]
    h_new = hnew_p[:B, :H][None, :, :]   # (num_layers=1, B, H)
    return logit, h_new


def init_params(key, input_size, hidden_size, output_size):
    """Raw parameters in PyTorch nn.GRU / nn.Linear layout (gate order [r|z|n])."""
    ks = jax.random.split(key, 6)
    s = 0.1
    H, C, O = hidden_size, input_size, output_size
    return {
        "wih": s * jax.random.normal(ks[0], (3 * H, C), jnp.float32),
        "whh": s * jax.random.normal(ks[1], (3 * H, H), jnp.float32),
        "bih": s * jax.random.normal(ks[2], (3 * H,), jnp.float32),
        "bhh": s * jax.random.normal(ks[3], (3 * H,), jnp.float32),
        "who": s * jax.random.normal(ks[4], (O, H), jnp.float32),
        "bho": s * jax.random.normal(ks[5], (O,), jnp.float32),
    }


def pack_params(raw, *, tn=512):
    """Pack raw PyTorch-layout weights into padded, gate-split kernel layout."""
    threeH, _ = raw["wih"].shape
    H = threeH // 3
    O = raw["who"].shape[0]
    Hp = _round_up(H, 128)
    TN = min(tn, _round_up(O, 128))
    Op = _round_up(O, TN)

    wih_g = raw["wih"].reshape(3, H, -1)     # gate-split: [r, z, n]
    whh_g = raw["whh"].reshape(3, H, H)
    bih_g = raw["bih"].reshape(3, H)
    bhh_g = raw["bhh"].reshape(3, H)

    # Input weights as a gather table W_ih^T, per gate: (C, 3, Hp) f32.
    wih3 = jnp.pad(jnp.transpose(wih_g, (2, 0, 1)), ((0, 0), (0, 0), (0, Hp - H)))
    bih3 = jnp.pad(bih_g, ((0, 0), (0, Hp - H)))

    def pad_hh(w):   # (H, H) -> (Hp, Hp)
        return jnp.pad(w, ((0, Hp - H), (0, Hp - H)))

    packed = {
        "wih3": wih3,
        "bih3": bih3,
        "whh_r": pad_hh(whh_g[0].T).astype(jnp.bfloat16),
        "whh_z": pad_hh(whh_g[1].T).astype(jnp.bfloat16),
        "whh_n": pad_hh(whh_g[2].T).astype(jnp.bfloat16),
        "bhh_r": jnp.pad(bhh_g[0], (0, Hp - H))[None, :],
        "bhh_z": jnp.pad(bhh_g[1], (0, Hp - H))[None, :],
        "bhh_n": jnp.pad(bhh_g[2], (0, Hp - H))[None, :],
        "who_t": jnp.pad(raw["who"].T, ((0, Hp - H), (0, Op - O))).astype(jnp.bfloat16),
        "bho": jnp.pad(raw["bho"], (0, Op - O))[None, :],
    }
    return packed, TN


def gru4rec_ref(item_idx, hidden, raw):
    """Plain-JAX reference mirroring the kernel's bf16 weight rounding."""
    bf = lambda w: w.astype(jnp.bfloat16).astype(jnp.float32)
    # one-hot @ W_ih^T == row gather of W_ih^T (exact)
    gi = raw["wih"].T[item_idx] + raw["bih"]
    h = hidden[0]
    gh = bf(h) @ bf(raw["whh"]).T + raw["bhh"]
    i_r, i_z, i_n = jnp.split(gi, 3, axis=1)
    h_r, h_z, h_n = jnp.split(gh, 3, axis=1)
    r = jax.nn.sigmoid(i_r + h_r)
    z = jax.nn.sigmoid(i_z + h_z)
    n = jnp.tanh(i_n + r * h_n)
    h_new = (1.0 - z) * n + z * h
    logit = jnp.tanh(bf(h_new) @ bf(raw["who"]).T + raw["bho"])
    return logit, h_new[None, :, :]


if __name__ == "__main__":
    # Small shapes: num items C = output_size = 64, hidden = 32, batch = 8.
    input_size = 64
    output_size = 64
    hidden_size = 32
    batch = 8

    key = jax.random.PRNGKey(0)
    kp, ki, kh = jax.random.split(key, 3)

    raw = init_params(kp, input_size, hidden_size, output_size)
    packed, block_n = pack_params(raw, tn=512)

    item_idx = jax.random.randint(ki, (batch,), 0, input_size, dtype=jnp.int32)
    # Use a non-zero hidden state to exercise the recurrent path (init_hidden() would be zeros).
    hidden0 = 0.1 * jax.random.normal(kh, (1, batch, hidden_size), jnp.float32)

    logit, hidden1 = gru4rec_forward(item_idx, hidden0, packed,
                                     output_size=output_size, block_n=block_n)
    jax.block_until_ready((logit, hidden1))

    assert logit.shape == (batch, output_size)
    assert hidden1.shape == (1, batch, hidden_size)

    ref_logit, ref_hidden = gru4rec_ref(item_idx, hidden0, raw)
    assert jnp.allclose(logit, ref_logit, atol=2e-3), \
        float(jnp.max(jnp.abs(logit - ref_logit)))
    assert jnp.allclose(hidden1, ref_hidden, atol=2e-3), \
        float(jnp.max(jnp.abs(hidden1 - ref_hidden)))

    print("KERNEL_OK")
</pallas_src>

<mosaic_0001>
module attributes {stable_mosaic.version = 11 : i64} {
  func.func @gru4rec_kernel(%arg0: i32, %arg1: memref<8x128xf32, #tpu.memory_space<vmem>>, %arg2: memref<8x128xf32, #tpu.memory_space<vmem>>, %arg3: memref<8x128xf32, #tpu.memory_space<vmem>>, %arg4: memref<8x128xf32, #tpu.memory_space<vmem>>, %arg5: memref<128x128xbf16, #tpu.memory_space<vmem>>, %arg6: memref<128x128xbf16, #tpu.memory_space<vmem>>, %arg7: memref<128x128xbf16, #tpu.memory_space<vmem>>, %arg8: memref<1x128xf32, #tpu.memory_space<vmem>>, %arg9: memref<1x128xf32, #tpu.memory_space<vmem>>, %arg10: memref<1x128xf32, #tpu.memory_space<vmem>>, %arg11: memref<128x128xbf16, #tpu.memory_space<vmem>>, %arg12: memref<1x128xf32, #tpu.memory_space<vmem>>, %arg13: memref<8x128xf32, #tpu.memory_space<vmem>>, %arg14: memref<8x128xf32, #tpu.memory_space<vmem>>) attributes {dimension_semantics = [#tpu.dimension_semantics<arbitrary>], iteration_bounds = array<i64: 1>, scalar_prefetch = 0 : i64, scratch_operands = 0 : i64, tpu.core_type = #tpu.core_type<tc>, window_params = [{pipeline_mode = #tpu.pipeline_mode<synchronous>, transform_indices = @transform_0, window_bounds = array<i64: 8, 128>}, {pipeline_mode = #tpu.pipeline_mode<synchronous>, transform_indices = @transform_1, window_bounds = array<i64: 8, 128>}, {pipeline_mode = #tpu.pipeline_mode<synchronous>, transform_indices = @transform_2, window_bounds = array<i64: 8, 128>}, {pipeline_mode = #tpu.pipeline_mode<synchronous>, transform_indices = @transform_3, window_bounds = array<i64: 8, 128>}, {pipeline_mode = #tpu.pipeline_mode<synchronous>, transform_indices = @transform_4, window_bounds = array<i64: 128, 128>}, {pipeline_mode = #tpu.pipeline_mode<synchronous>, transform_indices = @transform_5, window_bounds = array<i64: 128, 128>}, {pipeline_mode = #tpu.pipeline_mode<synchronous>, transform_indices = @transform_6, window_bounds = array<i64: 128, 128>}, {pipeline_mode = #tpu.pipeline_mode<synchronous>, transform_indices = @transform_7, window_bounds = array<i64: 1, 128>}, {pipeline_mode = #tpu.pipeline_mode<synchronous>, transform_indices = @transform_8, window_bounds = array<i64: 1, 128>}, {pipeline_mode = #tpu.pipeline_mode<synchronous>, transform_indices = @transform_9, window_bounds = array<i64: 1, 128>}, {transform_indices = @transform_10, window_bounds = array<i64: 128, 128>}, {transform_indices = @transform_11, window_bounds = array<i64: 1, 128>}, {transform_indices = @transform_12, window_bounds = array<i64: 8, 128>}, {pipeline_mode = #tpu.pipeline_mode<synchronous>, transform_indices = @transform_13, window_bounds = array<i64: 8, 128>}]} {
    %c0_i32 = arith.constant 0 : i32
    %0 = arith.cmpi eq, %arg0, %c0_i32 : i32
    %1 = arith.extui %0 : i1 to i32
    %c0_i32_0 = arith.constant 0 : i32
    %2 = arith.cmpi ne, %1, %c0_i32_0 : i32
    scf.if %2 {
      %c0_8 = arith.constant 0 : index
      %c0_9 = arith.constant 0 : index
      %12 = vector.load %arg4[%c0_8, %c0_9] : memref<8x128xf32, #tpu.memory_space<vmem>>, vector<8x128xf32>
      %13 = arith.truncf %12 : vector<8x128xf32> to vector<8x128xbf16>
      %c0_10 = arith.constant 0 : index
      %c0_11 = arith.constant 0 : index
      %14 = vector.load %arg5[%c0_10, %c0_11] : memref<128x128xbf16, #tpu.memory_space<vmem>>, vector<128x128xbf16>
      %cst_12 = arith.constant dense<0.000000e+00> : vector<8x128xf32>
      %15 = tpu.matmul %13, %14, %cst_12 {dimension_numbers = #tpu.dot_dimension_numbers<[1], [0], [0], [1], [0, 0, 1, 1], [], []>} : vector<8x128xbf16>, vector<128x128xbf16>, vector<8x128xf32> -> vector<8x128xf32>
      %c0_13 = arith.constant 0 : index
      %c0_14 = arith.constant 0 : index
      %16 = vector.load %arg8[%c0_13, %c0_14] : memref<1x128xf32, #tpu.memory_space<vmem>>, vector<1x128xf32>
      %17 = vector.broadcast %16 : vector<1x128xf32> to vector<8x128xf32>
      %18 = arith.addf %15, %17 : vector<8x128xf32>
      %c0_15 = arith.constant 0 : index
      %c0_16 = arith.constant 0 : index
      %19 = vector.load %arg6[%c0_15, %c0_16] : memref<128x128xbf16, #tpu.memory_space<vmem>>, vector<128x128xbf16>
      %cst_17 = arith.constant dense<0.000000e+00> : vector<8x128xf32>
      %20 = tpu.matmul %13, %19, %cst_17 {dimension_numbers = #tpu.dot_dimension_numbers<[1], [0], [0], [1], [0, 0, 1, 1], [], []>} : vector<8x128xbf16>, vector<128x128xbf16>, vector<8x128xf32> -> vector<8x128xf32>
      %c0_18 = arith.constant 0 : index
      %c0_19 = arith.constant 0 : index
      %21 = vector.load %arg9[%c0_18, %c0_19] : memref<1x128xf32, #tpu.memory_space<vmem>>, vector<1x128xf32>
      %22 = vector.broadcast %21 : vector<1x128xf32> to vector<8x128xf32>
      %23 = arith.addf %20, %22 : vector<8x128xf32>
      %c0_20 = arith.constant 0 : index
      %c0_21 = arith.constant 0 : index
      %24 = vector.load %arg7[%c0_20, %c0_21] : memref<128x128xbf16, #tpu.memory_space<vmem>>, vector<128x128xbf16>
      %cst_22 = arith.constant dense<0.000000e+00> : vector<8x128xf32>
      %25 = tpu.matmul %13, %24, %cst_22 {dimension_numbers = #tpu.dot_dimension_numbers<[1], [0], [0], [1], [0, 0, 1, 1], [], []>} : vector<8x128xbf16>, vector<128x128xbf16>, vector<8x128xf32> -> vector<8x128xf32>
      %c0_23 = arith.constant 0 : index
      %c0_24 = arith.constant 0 : index
      %26 = vector.load %arg10[%c0_23, %c0_24] : memref<1x128xf32, #tpu.memory_space<vmem>>, vector<1x128xf32>
      %27 = vector.broadcast %26 : vector<1x128xf32> to vector<8x128xf32>
      %28 = arith.addf %25, %27 : vector<8x128xf32>
      %c0_25 = arith.constant 0 : index
      %c0_26 = arith.constant 0 : index
      %29 = vector.load %arg1[%c0_25, %c0_26] : memref<8x128xf32, #tpu.memory_space<vmem>>, vector<8x128xf32>
      %30 = arith.addf %29, %18 : vector<8x128xf32>
      %31 = arith.negf %30 : vector<8x128xf32>
      %32 = math.exp %31 : vector<8x128xf32>
      %cst_27 = arith.constant 1.000000e+00 : f32
      %33 = vector.broadcast %cst_27 : f32 to vector<8x128xf32>
      %34 = arith.addf %33, %32 : vector<8x128xf32>
      %35 = arith.divf %33, %34 : vector<8x128xf32>
      %c0_28 = arith.constant 0 : index
      %c0_29 = arith.constant 0 : index
      %36 = vector.load %arg2[%c0_28, %c0_29] : memref<8x128xf32, #tpu.memory_space<vmem>>, vector<8x128xf32>
      %37 = arith.addf %36, %23 : vector<8x128xf32>
      %38 = arith.negf %37 : vector<8x128xf32>
      %39 = math.exp %38 : vector<8x128xf32>
      %cst_30 = arith.constant 1.000000e+00 : f32
      %40 = vector.broadcast %cst_30 : f32 to vector<8x128xf32>
      %41 = arith.addf %40, %39 : vector<8x128xf32>
      %42 = arith.divf %40, %41 : vector<8x128xf32>
      %c0_31 = arith.constant 0 : index
      %c0_32 = arith.constant 0 : index
      %43 = vector.load %arg3[%c0_31, %c0_32] : memref<8x128xf32, #tpu.memory_space<vmem>>, vector<8x128xf32>
      %44 = arith.mulf %35, %28 : vector<8x128xf32>
      %45 = arith.addf %43, %44 : vector<8x128xf32>
      %46 = math.tanh %45 : vector<8x128xf32>
      %cst_33 = arith.constant 1.000000e+00 : f32
      %47 = vector.broadcast %cst_33 : f32 to vector<8x128xf32>
      %48 = arith.subf %47, %42 : vector<8x128xf32>
      %49 = arith.mulf %48, %46 : vector<8x128xf32>
      %50 = arith.mulf %42, %12 : vector<8x128xf32>
      %51 = arith.addf %49, %50 : vector<8x128xf32>
      %c0_34 = arith.constant 0 : index
      %c0_35 = arith.constant 0 : index
      %52 = vector.load %arg14[%c0_34, %c0_35] : memref<8x128xf32, #tpu.memory_space<vmem>>, vector<8x128xf32>
      tpu.vector_store %arg14[%c0_34, %c0_35], %51 {strides = array<i32>} : memref<8x128xf32, #tpu.memory_space<vmem>>, vector<8x128xf32>,
    } else {
    }
    %c0 = arith.constant 0 : index
    %c0_1 = arith.constant 0 : index
    %3 = vector.load %arg14[%c0, %c0_1] : memref<8x128xf32, #tpu.memory_space<vmem>>, vector<8x128xf32>
    %4 = arith.truncf %3 : vector<8x128xf32> to vector<8x128xbf16>
    %c0_2 = arith.constant 0 : index
    %c0_3 = arith.constant 0 : index
    %5 = vector.load %arg11[%c0_2, %c0_3] : memref<128x128xbf16, #tpu.memory_space<vmem>>, vector<128x128xbf16>
    %cst = arith.constant dense<0.000000e+00> : vector<8x128xf32>
    %6 = tpu.matmul %4, %5, %cst {dimension_numbers = #tpu.dot_dimension_numbers<[1], [0], [0], [1], [0, 0, 1, 1], [], []>} : vector<8x128xbf16>, vector<128x128xbf16>, vector<8x128xf32> -> vector<8x128xf32>
    %c0_4 = arith.constant 0 : index
    %c0_5 = arith.constant 0 : index
    %7 = vector.load %arg12[%c0_4, %c0_5] : memref<1x128xf32, #tpu.memory_space<vmem>>, vector<1x128xf32>
    %8 = vector.broadcast %7 : vector<1x128xf32> to vector<8x128xf32>
    %9 = arith.addf %6, %8 : vector<8x128xf32>
    %10 = math.tanh %9 : vector<8x128xf32>
    %c0_6 = arith.constant 0 : index
    %c0_7 = arith.constant 0 : index
    %11 = vector.load %arg13[%c0_6, %c0_7] : memref<8x128xf32, #tpu.memory_space<vmem>>, vector<8x128xf32>
    tpu.vector_store %arg13[%c0_6, %c0_7], %10 {strides = array<i32>} : memref<8x128xf32, #tpu.memory_space<vmem>>, vector<8x128xf32>,
    return
  }
  func.func @transform_0(%arg0: i32) -> (i32, i32) {
    %c0_i32 = arith.constant 0 : i32
    %c0_i32_0 = arith.constant 0 : i32
    %c0_i32_1 = arith.constant 0 : i32
    return %c0_i32, %c0_i32_0 : i32, i32
  }
  func.func @transform_1(%arg0: i32) -> (i32, i32) {
    %c0_i32 = arith.constant 0 : i32
    %c0_i32_0 = arith.constant 0 : i32
    %c0_i32_1 = arith.constant 0 : i32
    return %c0_i32, %c0_i32_0 : i32, i32
  }
  func.func @transform_2(%arg0: i32) -> (i32, i32) {
    %c0_i32 = arith.constant 0 : i32
    %c0_i32_0 = arith.constant 0 : i32
    %c0_i32_1 = arith.constant 0 : i32
    return %c0_i32, %c0_i32_0 : i32, i32
  }
  func.func @transform_3(%arg0: i32) -> (i32, i32) {
    %c0_i32 = arith.constant 0 : i32
    %c0_i32_0 = arith.constant 0 : i32
    %c0_i32_1 = arith.constant 0 : i32
    return %c0_i32, %c0_i32_0 : i32, i32
  }
  func.func @transform_4(%arg0: i32) -> (i32, i32) {
    %c0_i32 = arith.constant 0 : i32
    %c0_i32_0 = arith.constant 0 : i32
    %c0_i32_1 = arith.constant 0 : i32
    return %c0_i32, %c0_i32_0 : i32, i32
  }
  func.func @transform_5(%arg0: i32) -> (i32, i32) {
    %c0_i32 = arith.constant 0 : i32
    %c0_i32_0 = arith.constant 0 : i32
    %c0_i32_1 = arith.constant 0 : i32
    return %c0_i32, %c0_i32_0 : i32, i32
  }
  func.func @transform_6(%arg0: i32) -> (i32, i32) {
    %c0_i32 = arith.constant 0 : i32
    %c0_i32_0 = arith.constant 0 : i32
    %c0_i32_1 = arith.constant 0 : i32
    return %c0_i32, %c0_i32_0 : i32, i32
  }
  func.func @transform_7(%arg0: i32) -> (i32, i32) {
    %c0_i32 = arith.constant 0 : i32
    %c0_i32_0 = arith.constant 0 : i32
    %c0_i32_1 = arith.constant 0 : i32
    return %c0_i32, %c0_i32_0 : i32, i32
  }
  func.func @transform_8(%arg0: i32) -> (i32, i32) {
    %c0_i32 = arith.constant 0 : i32
    %c0_i32_0 = arith.constant 0 : i32
    %c0_i32_1 = arith.constant 0 : i32
    return %c0_i32, %c0_i32_0 : i32, i32
  }
  func.func @transform_9(%arg0: i32) -> (i32, i32) {
    %c0_i32 = arith.constant 0 : i32
    %c0_i32_0 = arith.constant 0 : i32
    %c0_i32_1 = arith.constant 0 : i32
    return %c0_i32, %c0_i32_0 : i32, i32
  }
  func.func @transform_10(%arg0: i32) -> (i32, i32) {
    %c0_i32 = arith.constant 0 : i32
    %c0_i32_0 = arith.constant 0 : i32
    return %c0_i32, %arg0 : i32, i32
  }
  func.func @transform_11(%arg0: i32) -> (i32, i32) {
    %c0_i32 = arith.constant 0 : i32
    %c0_i32_0 = arith.constant 0 : i32
    return %c0_i32, %arg0 : i32, i32
  }
  func.func @transform_12(%arg0: i32) -> (i32, i32) {
    %c0_i32 = arith.constant 0 : i32
    %c0_i32_0 = arith.constant 0 : i32
    return %c0_i32, %arg0 : i32, i32
  }
  func.func @transform_13(%arg0: i32) -> (i32, i32) {
    %c0_i32 = arith.constant 0 : i32
    %c0_i32_0 = arith.constant 0 : i32
    %c0_i32_1 = arith.constant 0 : i32
    return %c0_i32, %c0_i32_0 : i32, i32
  }
}

</mosaic_0001>

<llo_original>
// kernel: gru4rec_forward.1
$region0: #{gru4rec_forward.1}
  #allocation0 [shape = 'u32[]', space=smem, size = 0x4, offset = 0x4, fixed_abs, tag = 'smem constant byte address 0x4 - core index']
  #allocation1 [shape = 'u32[144,128]{1,0:T(1,128)}', space=vmem, size = 0x12000, scoped, tag = 'internal scratch']
  %s0 = inlined_call_operand.vmem [shape: f32[8,128], index: 0, kind: input, shape index: {}]
  %s1 = inlined_call_operand.vmem [shape: f32[8,128], index: 1, kind: input, shape index: {}]
  %s2 = inlined_call_operand.vmem [shape: f32[8,128], index: 2, kind: input, shape index: {}]
  %s3 = inlined_call_operand.vmem [shape: f32[8,128], index: 3, kind: input, shape index: {}]
  %s4 = inlined_call_operand.vmem [shape: bf16[128,128], index: 4, kind: input, shape index: {}]
  %s5 = inlined_call_operand.vmem [shape: bf16[128,128], index: 5, kind: input, shape index: {}]
  %s6 = inlined_call_operand.vmem [shape: bf16[128,128], index: 6, kind: input, shape index: {}]
  %s7 = inlined_call_operand.vmem [shape: f32[1,128], index: 7, kind: input, shape index: {}]
  %s8 = inlined_call_operand.vmem [shape: f32[1,128], index: 8, kind: input, shape index: {}]
  %s9 = inlined_call_operand.vmem [shape: f32[1,128], index: 9, kind: input, shape index: {}]
  %s10 = inlined_call_operand.vmem [shape: bf16[128,128], index: 10, kind: input, shape index: {}]
  %s11 = inlined_call_operand.vmem [shape: f32[1,128], index: 11, kind: input, shape index: {}]
  %s12 = inlined_call_operand.hbm [shape: f32[8,128], index: 12, kind: output, shape index: {0}]
  %s13 = inlined_call_operand.vmem [shape: f32[8,128], index: 13, kind: output, shape index: {1}]
  %14 = xla_tuple %s12, %s13
  %s15 = sld [smem:[#allocation0]]
  $region70: #{gru4rec_forward.1} parent=0
    _
  %s17 = ssub.s32 1, %s15
  %s18 = scalar_select 0, %s17, %s15
  $region1: #{gru4rec_forward.1} parent=0
    #allocation2 [shape = 'u8[4096]{0}', space=vmem, size = 0x1000, scoped, tag = 'output window, operand 0, single buffered']
    #allocation3 [shape = 's32[1]{0}', space=sflag, size = 0x4, scoped, tag = 'scoped memory for gru4rec_forward.1']
    %19 = vsyncpa [#allocation3], 0
    // Predicated region
    $region2: #{gru4rec_forward.1} parent=1 // pred_check
      _
    $region3: #{gru4rec_forward.1} parent=1 // pred_check_branch
      %21 = sbr.rel (0) target = $region5
    $region4: #{gru4rec_forward.1} parent=1 // pred_region
      _
    $region5: #{gru4rec_forward.1} parent=1 // pred_fallthru
      _
    // Predicated region
    $region6: #{gru4rec_forward.1} parent=1 // pred_check
      _
    $region7: #{gru4rec_forward.1} parent=1 // pred_check_branch
      %23 = sbr.rel (0) target = $region9
    $region8: #{gru4rec_forward.1} parent=1 // pred_region
      _
    $region9: #{gru4rec_forward.1} parent=1 // pred_fallthru
      _
    // Predicated region
    $region10: #{gru4rec_forward.1} parent=1 // pred_check
      _
    $region11: #{gru4rec_forward.1} parent=1 // pred_check_branch
      %25 = sbr.rel (0) target = $region13
    $region12: #{gru4rec_forward.1} parent=1 // pred_region
      _
    $region13: #{gru4rec_forward.1} parent=1 // pred_fallthru
      _
    // Predicated region
    $region14: #{gru4rec_forward.1} parent=1 // pred_check
      _
    $region15: #{gru4rec_forward.1} parent=1 // pred_check_branch
      %27 = sbr.rel (0) target = $region17
    $region16: #{gru4rec_forward.1} parent=1 // pred_region
      _
    $region17: #{gru4rec_forward.1} parent=1 // pred_fallthru
      _
    // Predicated region
    $region18: #{gru4rec_forward.1} parent=1 // pred_check
      _
    $region19: #{gru4rec_forward.1} parent=1 // pred_check_branch
      %29 = sbr.rel (0) target = $region21
    $region20: #{gru4rec_forward.1} parent=1 // pred_region
      _
    $region21: #{gru4rec_forward.1} parent=1 // pred_fallthru
      _
    // Predicated region
    $region22: #{gru4rec_forward.1} parent=1 // pred_check
      _
    $region23: #{gru4rec_forward.1} parent=1 // pred_check_branch
      %31 = sbr.rel (0) target = $region25
    $region24: #{gru4rec_forward.1} parent=1 // pred_region
      _
    $region25: #{gru4rec_forward.1} parent=1 // pred_fallthru
      _
    // Predicated region
    $region26: #{gru4rec_forward.1} parent=1 // pred_check
      _
    $region27: #{gru4rec_forward.1} parent=1 // pred_check_branch
      %33 = sbr.rel (0) target = $region29
    $region28: #{gru4rec_forward.1} parent=1 // pred_region
      _
    $region29: #{gru4rec_forward.1} parent=1 // pred_fallthru
      _
    // Predicated region
    $region30: #{gru4rec_forward.1} parent=1 // pred_check
      _
    $region31: #{gru4rec_forward.1} parent=1 // pred_check_branch
      %35 = sbr.rel (0) target = $region33
    $region32: #{gru4rec_forward.1} parent=1 // pred_region
      _
    $region33: #{gru4rec_forward.1} parent=1 // pred_fallthru
      _
    // Predicated region
    $region34: #{gru4rec_forward.1} parent=1 // pred_check
      _
    $region35: #{gru4rec_forward.1} parent=1 // pred_check_branch
      %37 = sbr.rel (0) target = $region37
    $region36: #{gru4rec_forward.1} parent=1 // pred_region
      _
    $region37: #{gru4rec_forward.1} parent=1 // pred_fallthru
      _
    // Predicated region
    $region38: #{gru4rec_forward.1} parent=1 // pred_check
      _
    $region39: #{gru4rec_forward.1} parent=1 // pred_check_branch
      %39 = sbr.rel (0) target = $region41
    $region40: #{gru4rec_forward.1} parent=1 // pred_region
      _
    $region41: #{gru4rec_forward.1} parent=1 // pred_fallthru
      _
    // Predicated region
    $region42: #{gru4rec_forward.1} parent=1 // pred_check
      _
    $region43: #{gru4rec_forward.1} parent=1 // pred_check_branch
      %41 = sbr.rel (0) target = $region45
    $region44: #{gru4rec_forward.1} parent=1 // pred_region
      _
    $region45: #{gru4rec_forward.1} parent=1 // pred_fallthru
      _
    // Predicated region
    $region46: #{gru4rec_forward.1} parent=1 // pred_check
      _
    $region47: #{gru4rec_forward.1} parent=1 // pred_check_branch
      %43 = sbr.rel (0) target = $region49
    $region48: #{gru4rec_forward.1} parent=1 // pred_region
      _
    $region49: #{gru4rec_forward.1} parent=1 // pred_fallthru
      _
    %p45 = scmp.eq.s32.totalorder 0, 0
    // Predicated region
    $region50: #{gru4rec_forward.1} parent=1 // pred_check
      %p46 = pneg %p45
    $region51: #{gru4rec_forward.1} parent=1 // pred_check_branch
      %48 = sbr.rel (%p46) target = $region53
    $region52: #{gru4rec_forward.1} parent=1 // pred_region
      %v49 = vld [vmem:[%s3] sm:$0xff]
      %v50 = vpack.c.bf16 %v49, %v49
      %v51 = vld [vmem:[%s4] sm:$0xf]
      %v52 = vld [vmem:[%s4 + $0x4] sm:$0xf]
      %v53 = vld [vmem:[%s4 + $0x8] sm:$0xf]
      %v54 = vld [vmem:[%s4 + $0xc] sm:$0xf]
      %v55 = vld [vmem:[%s4 + $0x10] sm:$0xf]
      %v56 = vld [vmem:[%s4 + $0x14] sm:$0xf]
      %v57 = vld [vmem:[%s4 + $0x18] sm:$0xf]
      %v58 = vld [vmem:[%s4 + $0x1c] sm:$0xf]
      %v59 = vld [vmem:[%s4 + $0x20] sm:$0xf]
      %v60 = vld [vmem:[%s4 + $0x24] sm:$0xf]
      %v61 = vld [vmem:[%s4 + $0x28] sm:$0xf]
      %v62 = vld [vmem:[%s4 + $0x2c] sm:$0xf]
      %v63 = vld [vmem:[%s4 + $0x30] sm:$0xf]
      %v64 = vld [vmem:[%s4 + $0x34] sm:$0xf]
      %v65 = vld [vmem:[%s4 + $0x38] sm:$0xf]
      %v66 = vld [vmem:[%s4 + $0x3c] sm:$0xf]
      %v67 = vld [vmem:[%s7] sm:$0x1]
      %v69 = vlaneseq
      %v70 = vshrl.u32 %v69, 7
      %v71 = vsub.s32 0, %v70
      %v72 = vrot.slane %v67, %v71
      %v90 = vunpack.c.l.b16 %v51
      %v91 = vunpack.c.l.b16 %v52
      %v92 = vunpack.c.l.b16 %v53
      %v93 = vunpack.c.l.b16 %v54
      %v94 = vunpack.c.l.b16 %v55
      %v95 = vunpack.c.l.b16 %v56
      %v96 = vunpack.c.l.b16 %v57
      %v97 = vunpack.c.l.b16 %v58
      %v98 = vunpack.c.l.b16 %v59
      %v99 = vunpack.c.l.b16 %v60
      %v100 = vunpack.c.l.b16 %v61
      %v101 = vunpack.c.l.b16 %v62
      %v102 = vunpack.c.l.b16 %v63
      %v103 = vunpack.c.l.b16 %v64
      %v104 = vunpack.c.l.b16 %v65
      %v105 = vunpack.c.l.b16 %v66
      %v106 = vpack.c.b16 %v91, %v90
      %v107 = vpack.c.b16 %v93, %v92
      %v108 = vpack.c.b16 %v95, %v94
      %v109 = vpack.c.b16 %v97, %v96
      %v110 = vpack.c.b16 %v99, %v98
      %v111 = vpack.c.b16 %v101, %v100
      %v112 = vpack.c.b16 %v103, %v102
      %v113 = vpack.c.b16 %v105, %v104
      %122 = vmatprep.subr.bf16.mxu0 0
      %123 = vmatpush1.bf16.msra.mxu0 %v113
      %124 = vmatprep.subr.bf16.mxu0 0
      %125 = vmatpush1.bf16.msra.mxu0 %v112
      %126 = vmatprep.subr.bf16.mxu0 0
      %127 = vmatpush1.bf16.msra.mxu0 %v111
      %128 = vmatprep.subr.bf16.mxu0 0
      %129 = vmatpush1.bf16.msra.mxu0 %v110
      %130 = vmatprep.subr.bf16.mxu0 0
      %131 = vmatpush1.bf16.msra.mxu0 %v109
      %132 = vmatprep.subr.bf16.mxu0 0
      %133 = vmatpush1.bf16.msra.mxu0 %v108
      %134 = vmatprep.subr.bf16.mxu0 0
      %135 = vmatpush1.bf16.msra.mxu0 %v107
      %136 = vmatprep.subr.bf16.mxu0 0
      %137 = vmatpush1.bf16.msra.mxu0 %v106
      %138 = vmatprep.subr.bf16.mxu0 0
      %139 = vmatpush2.bf16.msra.mxu0 0
      %140 = vmatprep.subr.bf16.mxu0 0
      %141 = vmatpush2.bf16.msra.mxu0 0
      %142 = vmatprep.subr.bf16.mxu0 0
      %143 = vmatpush2.bf16.msra.mxu0 0
      %144 = vmatprep.subr.bf16.mxu0 0
      %145 = vmatpush2.bf16.msra.mxu0 0
      %146 = vmatprep.subr.bf16.mxu0 0
      %147 = vmatpush2.bf16.msra.mxu0 0
      %148 = vmatprep.subr.bf16.mxu0 0
      %149 = vmatpush2.bf16.msra.mxu0 0
      %150 = vmatprep.subr.bf16.mxu0 0
      %151 = vmatpush2.bf16.msra.mxu0 0
      %152 = vmatprep.subr.bf16.mxu0 0
      %153 = vmatpush2.bf16.msra.mxu0 0
      %154 = vmatprep.mubr.bf16.mxu0 0
      %155 = vmatmul.mubr.bf16.gmra.mxu0 %v50
      %v156 = vpop.f32.mrf.mxu0
      %v157 = vadd.f32 %v72, %v156
      %v158 = vpop.f32.mrf.mxu0
      %v159 = vpop.f32.mrf.mxu0
      %v160 = vpop.f32.mrf.mxu0
      %161 = vdwg.mxu0
      %v162 = vld [vmem:[%s5] sm:$0xf]
      %v163 = vld [vmem:[%s5 + $0x4] sm:$0xf]
      %v164 = vld [vmem:[%s5 + $0x8] sm:$0xf]
      %v165 = vld [vmem:[%s5 + $0xc] sm:$0xf]
      %v166 = vld [vmem:[%s5 + $0x10] sm:$0xf]
      %v167 = vld [vmem:[%s5 + $0x14] sm:$0xf]
      %v168 = vld [vmem:[%s5 + $0x18] sm:$0xf]
      %v169 = vld [vmem:[%s5 + $0x1c] sm:$0xf]
      %v170 = vld [vmem:[%s5 + $0x20] sm:$0xf]
      %v171 = vld [vmem:[%s5 + $0x24] sm:$0xf]
      %v172 = vld [vmem:[%s5 + $0x28] sm:$0xf]
      %v173 = vld [vmem:[%s5 + $0x2c] sm:$0xf]
      %v174 = vld [vmem:[%s5 + $0x30] sm:$0xf]
      %v175 = vld [vmem:[%s5 + $0x34] sm:$0xf]
      %v176 = vld [vmem:[%s5 + $0x38] sm:$0xf]
      %v177 = vld [vmem:[%s5 + $0x3c] sm:$0xf]
      %v178 = vld [vmem:[%s8] sm:$0x1]
      %v180 = vlaneseq
      %v181 = vshrl.u32 %v180, 7
      %v182 = vsub.s32 0, %v181
      %v183 = vrot.slane %v178, %v182
      %v201 = vunpack.c.l.b16 %v162
      %v202 = vunpack.c.l.b16 %v163
      %v203 = vunpack.c.l.b16 %v164
      %v204 = vunpack.c.l.b16 %v165
      %v205 = vunpack.c.l.b16 %v166
      %v206 = vunpack.c.l.b16 %v167
      %v207 = vunpack.c.l.b16 %v168
      %v208 = vunpack.c.l.b16 %v169
      %v209 = vunpack.c.l.b16 %v170
      %v210 = vunpack.c.l.b16 %v171
      %v211 = vunpack.c.l.b16 %v172
      %v212 = vunpack.c.l.b16 %v173
      %v213 = vunpack.c.l.b16 %v174
      %v214 = vunpack.c.l.b16 %v175
      %v215 = vunpack.c.l.b16 %v176
      %v216 = vunpack.c.l.b16 %v177
      %v217 = vpack.c.b16 %v202, %v201
      %v218 = vpack.c.b16 %v204, %v203
      %v219 = vpack.c.b16 %v206, %v205
      %v220 = vpack.c.b16 %v208, %v207
      %v221 = vpack.c.b16 %v210, %v209
      %v222 = vpack.c.b16 %v212, %v211
      %v223 = vpack.c.b16 %v214, %v213
      %v224 = vpack.c.b16 %v216, %v215
      %233 = vmatprep.subr.bf16.mxu0 0
      %234 = vmatpush1.bf16.msra.mxu0 %v224
      %235 = vmatprep.subr.bf16.mxu0 0
      %236 = vmatpush1.bf16.msra.mxu0 %v223
      %237 = vmatprep.subr.bf16.mxu0 0
      %238 = vmatpush1.bf16.msra.mxu0 %v222
      %239 = vmatprep.subr.bf16.mxu0 0
      %240 = vmatpush1.bf16.msra.mxu0 %v221
      %241 = vmatprep.subr.bf16.mxu0 0
      %242 = vmatpush1.bf16.msra.mxu0 %v220
      %243 = vmatprep.subr.bf16.mxu0 0
      %244 = vmatpush1.bf16.msra.mxu0 %v219
      %245 = vmatprep.subr.bf16.mxu0 0
      %246 = vmatpush1.bf16.msra.mxu0 %v218
      %247 = vmatprep.subr.bf16.mxu0 0
      %248 = vmatpush1.bf16.msra.mxu0 %v217
      %249 = vmatprep.subr.bf16.mxu0 0
      %250 = vmatpush2.bf16.msra.mxu0 0
      %251 = vmatprep.subr.bf16.mxu0 0
      %252 = vmatpush2.bf16.msra.mxu0 0
      %253 = vmatprep.subr.bf16.mxu0 0
      %254 = vmatpush2.bf16.msra.mxu0 0
      %255 = vmatprep.subr.bf16.mxu0 0
      %256 = vmatpush2.bf16.msra.mxu0 0
      %257 = vmatprep.subr.bf16.mxu0 0
      %258 = vmatpush2.bf16.msra.mxu0 0
      %259 = vmatprep.subr.bf16.mxu0 0
      %260 = vmatpush2.bf16.msra.mxu0 0
      %261 = vmatprep.subr.bf16.mxu0 0
      %262 = vmatpush2.bf16.msra.mxu0 0
      %263 = vmatprep.subr.bf16.mxu0 0
      %264 = vmatpush2.bf16.msra.mxu0 0
      %265 = vmatprep.mubr.bf16.mxu0 0
      %266 = vmatmul.mubr.bf16.gmra.mxu0 %v50
      %v267 = vpop.f32.mrf.mxu0
      %v268 = vadd.f32 %v183, %v267
      %v269 = vpop.f32.mrf.mxu0
      %v270 = vpop.f32.mrf.mxu0
      %v271 = vpop.f32.mrf.mxu0
      %272 = vdwg.mxu0
      %v273 = vld [vmem:[%s6] sm:$0xf]
      %v274 = vld [vmem:[%s6 + $0x4] sm:$0xf]
      %v275 = vld [vmem:[%s6 + $0x8] sm:$0xf]
      %v276 = vld [vmem:[%s6 + $0xc] sm:$0xf]
      %v277 = vld [vmem:[%s6 + $0x10] sm:$0xf]
      %v278 = vld [vmem:[%s6 + $0x14] sm:$0xf]
      %v279 = vld [vmem:[%s6 + $0x18] sm:$0xf]
      %v280 = vld [vmem:[%s6 + $0x1c] sm:$0xf]
      %v281 = vld [vmem:[%s6 + $0x20] sm:$0xf]
      %v282 = vld [vmem:[%s6 + $0x24] sm:$0xf]
      %v283 = vld [vmem:[%s6 + $0x28] sm:$0xf]
      %v284 = vld [vmem:[%s6 + $0x2c] sm:$0xf]
      %v285 = vld [vmem:[%s6 + $0x30] sm:$0xf]
      %v286 = vld [vmem:[%s6 + $0x34] sm:$0xf]
      %v287 = vld [vmem:[%s6 + $0x38] sm:$0xf]
      %v288 = vld [vmem:[%s6 + $0x3c] sm:$0xf]
      %v289 = vld [vmem:[%s9] sm:$0x1]
      %v291 = vlaneseq
      %v292 = vshrl.u32 %v291, 7
      %v293 = vsub.s32 0, %v292
      %v294 = vrot.slane %v289, %v293
      %v312 = vunpack.c.l.b16 %v273
      %v313 = vunpack.c.l.b16 %v274
      %v314 = vunpack.c.l.b16 %v275
      %v315 = vunpack.c.l.b16 %v276
      %v316 = vunpack.c.l.b16 %v277
      %v317 = vunpack.c.l.b16 %v278
      %v318 = vunpack.c.l.b16 %v279
      %v319 = vunpack.c.l.b16 %v280
      %v320 = vunpack.c.l.b16 %v281
      %v321 = vunpack.c.l.b16 %v282
      %v322 = vunpack.c.l.b16 %v283
      %v323 = vunpack.c.l.b16 %v284
      %v324 = vunpack.c.l.b16 %v285
      %v325 = vunpack.c.l.b16 %v286
      %v326 = vunpack.c.l.b16 %v287
      %v327 = vunpack.c.l.b16 %v288
      %v328 = vpack.c.b16 %v313, %v312
      %v329 = vpack.c.b16 %v315, %v314
      %v330 = vpack.c.b16 %v317, %v316
      %v331 = vpack.c.b16 %v319, %v318
      %v332 = vpack.c.b16 %v321, %v320
      %v333 = vpack.c.b16 %v323, %v322
      %v334 = vpack.c.b16 %v325, %v324
      %v335 = vpack.c.b16 %v327, %v326
      %344 = vmatprep.subr.bf16.mxu0 0
      %345 = vmatpush1.bf16.msra.mxu0 %v335
      %346 = vmatprep.subr.bf16.mxu0 0
      %347 = vmatpush1.bf16.msra.mxu0 %v334
      %348 = vmatprep.subr.bf16.mxu0 0
      %349 = vmatpush1.bf16.msra.mxu0 %v333
      %350 = vmatprep.subr.bf16.mxu0 0
      %351 = vmatpush1.bf16.msra.mxu0 %v332
      %352 = vmatprep.subr.bf16.mxu0 0
      %353 = vmatpush1.bf16.msra.mxu0 %v331
      %354 = vmatprep.subr.bf16.mxu0 0
      %355 = vmatpush1.bf16.msra.mxu0 %v330
      %356 = vmatprep.subr.bf16.mxu0 0
      %357 = vmatpush1.bf16.msra.mxu0 %v329
      %358 = vmatprep.subr.bf16.mxu0 0
      %359 = vmatpush1.bf16.msra.mxu0 %v328
      %360 = vmatprep.subr.bf16.mxu0 0
      %361 = vmatpush2.bf16.msra.mxu0 0
      %362 = vmatprep.subr.bf16.mxu0 0
      %363 = vmatpush2.bf16.msra.mxu0 0
      %364 = vmatprep.subr.bf16.mxu0 0
      %365 = vmatpush2.bf16.msra.mxu0 0
      %366 = vmatprep.subr.bf16.mxu0 0
      %367 = vmatpush2.bf16.msra.mxu0 0
      %368 = vmatprep.subr.bf16.mxu0 0
      %369 = vmatpush2.bf16.msra.mxu0 0
      %370 = vmatprep.subr.bf16.mxu0 0
      %371 = vmatpush2.bf16.msra.mxu0 0
      %372 = vmatprep.subr.bf16.mxu0 0
      %373 = vmatpush2.bf16.msra.mxu0 0
      %374 = vmatprep.subr.bf16.mxu0 0
      %375 = vmatpush2.bf16.msra.mxu0 0
      %376 = vmatprep.mubr.bf16.mxu0 0
      %377 = vmatmul.mubr.bf16.gmra.mxu0 %v50
      %v378 = vpop.f32.mrf.mxu0
      %v379 = vadd.f32 %v294, %v378
      %v380 = vpop.f32.mrf.mxu0
      %v381 = vpop.f32.mrf.mxu0
      %v382 = vpop.f32.mrf.mxu0
      %383 = vdwg.mxu0
      %v384 = vld [vmem:[%s0] sm:$0xff]
      %v385 = vadd.f32 %v384, %v157
      %v386 = vxor.u32 %v385, 2147483648
      %v387 = vmul.f32 %v386, 1.442695
      %v388 = vpow.pop %v387
      %v389 = vadd.f32 %v388, 1.0
      %v390 = vrcp.pop %v389
      %v391 = vmul.f32 1.0, %v390
      %v392 = vld [vmem:[%s1] sm:$0xff]
      %v393 = vadd.f32 %v392, %v268
      %v394 = vxor.u32 %v393, 2147483648
      %v395 = vmul.f32 %v394, 1.442695
      %v396 = vpow.pop %v395
      %v397 = vadd.f32 %v396, 1.0
      %v398 = vrcp.pop %v397
      %v399 = vmul.f32 1.0, %v398
      %v400 = vld [vmem:[%s2] sm:$0xff]
      %v401 = vmul.f32 %v391, %v379
      %v402 = vadd.f32 %v400, %v401
      %v403 = vtanh.pop %v402
      %v404 = vsub.f32 1.0, %v399
      %v405 = vmul.f32 %v404, %v403
      %v406 = vmul.f32 %v399, %v49
      %v407 = vadd.f32 %v405, %v406
      %408 = vst [vmem:[%s13] sm:$0xff] %v407
    $region53: #{gru4rec_forward.1} parent=1 // pred_fallthru
      _
    %v409 = vld [vmem:[%s13] sm:$0xff]
    %v410 = vpack.c.bf16 %v409, %v409
    %v411 = vld [vmem:[%s10] sm:$0xf]
    %v412 = vld [vmem:[%s10 + $0x4] sm:$0xf]
    %v413 = vld [vmem:[%s10 + $0x8] sm:$0xf]
    %v414 = vld [vmem:[%s10 + $0xc] sm:$0xf]
    %v415 = vld [vmem:[%s10 + $0x10] sm:$0xf]
    %v416 = vld [vmem:[%s10 + $0x14] sm:$0xf]
    %v417 = vld [vmem:[%s10 + $0x18] sm:$0xf]
    %v418 = vld [vmem:[%s10 + $0x1c] sm:$0xf]
    %v419 = vld [vmem:[%s10 + $0x20] sm:$0xf]
    %v420 = vld [vmem:[%s10 + $0x24] sm:$0xf]
    %v421 = vld [vmem:[%s10 + $0x28] sm:$0xf]
    %v422 = vld [vmem:[%s10 + $0x2c] sm:$0xf]
    %v423 = vld [vmem:[%s10 + $0x30] sm:$0xf]
    %v424 = vld [vmem:[%s10 + $0x34] sm:$0xf]
    %v425 = vld [vmem:[%s10 + $0x38] sm:$0xf]
    %v426 = vld [vmem:[%s10 + $0x3c] sm:$0xf]
    %v427 = vld [vmem:[%s11] sm:$0x1]
    %v429 = vlaneseq
    %v430 = vshrl.u32 %v429, 7
    %v431 = vsub.s32 0, %v430
    %v432 = vrot.slane %v427, %v431
    %v450 = vunpack.c.l.b16 %v411
    %v451 = vunpack.c.l.b16 %v412
    %v452 = vunpack.c.l.b16 %v413
    %v453 = vunpack.c.l.b16 %v414
    %v454 = vunpack.c.l.b16 %v415
    %v455 = vunpack.c.l.b16 %v416
    %v456 = vunpack.c.l.b16 %v417
    %v457 = vunpack.c.l.b16 %v418
    %v458 = vunpack.c.l.b16 %v419
    %v459 = vunpack.c.l.b16 %v420
    %v460 = vunpack.c.l.b16 %v421
    %v461 = vunpack.c.l.b16 %v422
    %v462 = vunpack.c.l.b16 %v423
    %v463 = vunpack.c.l.b16 %v424
    %v464 = vunpack.c.l.b16 %v425
    %v465 = vunpack.c.l.b16 %v426
    %v466 = vpack.c.b16 %v451, %v450
    %v467 = vpack.c.b16 %v453, %v452
    %v468 = vpack.c.b16 %v455, %v454
    %v469 = vpack.c.b16 %v457, %v456
    %v470 = vpack.c.b16 %v459, %v458
    %v471 = vpack.c.b16 %v461, %v460
    %v472 = vpack.c.b16 %v463, %v462
    %v473 = vpack.c.b16 %v465, %v464
    %482 = vmatprep.subr.bf16.mxu0 0
    %483 = vmatpush1.bf16.msra.mxu0 %v473
    %484 = vmatprep.subr.bf16.mxu0 0
    %485 = vmatpush1.bf16.msra.mxu0 %v472
    %486 = vmatprep.subr.bf16.mxu0 0
    %487 = vmatpush1.bf16.msra.mxu0 %v471
    %488 = vmatprep.subr.bf16.mxu0 0
    %489 = vmatpush1.bf16.msra.mxu0 %v470
    %490 = vmatprep.subr.bf16.mxu0 0
    %491 = vmatpush1.bf16.msra.mxu0 %v469
    %492 = vmatprep.subr.bf16.mxu0 0
    %493 = vmatpush1.bf16.msra.mxu0 %v468
    %494 = vmatprep.subr.bf16.mxu0 0
    %495 = vmatpush1.bf16.msra.mxu0 %v467
    %496 = vmatprep.subr.bf16.mxu0 0
    %497 = vmatpush1.bf16.msra.mxu0 %v466
    %498 = vmatprep.subr.bf16.mxu0 0
    %499 = vmatpush2.bf16.msra.mxu0 0
    %500 = vmatprep.subr.bf16.mxu0 0
    %501 = vmatpush2.bf16.msra.mxu0 0
    %502 = vmatprep.subr.bf16.mxu0 0
    %503 = vmatpush2.bf16.msra.mxu0 0
    %504 = vmatprep.subr.bf16.mxu0 0
    %505 = vmatpush2.bf16.msra.mxu0 0
    %506 = vmatprep.subr.bf16.mxu0 0
    %507 = vmatpush2.bf16.msra.mxu0 0
    %508 = vmatprep.subr.bf16.mxu0 0
    %509 = vmatpush2.bf16.msra.mxu0 0
    %510 = vmatprep.subr.bf16.mxu0 0
    %511 = vmatpush2.bf16.msra.mxu0 0
    %512 = vmatprep.subr.bf16.mxu0 0
    %513 = vmatpush2.bf16.msra.mxu0 0
    %514 = vmatprep.mubr.bf16.mxu0 0
    %515 = vmatmul.mubr.bf16.gmra.mxu0 %v410
    %v516 = vpop.f32.mrf.mxu0
    %v517 = vadd.f32 %v432, %v516
    %v518 = vpop.f32.mrf.mxu0
    %v519 = vpop.f32.mrf.mxu0
    %v520 = vpop.f32.mrf.mxu0
    %521 = vdwg.mxu0
    %v522 = vtanh.pop %v517
    %523 = vst [vmem:[#allocation2] sm:$0xff] %v522
    // Predicated region
    $region54: #{gru4rec_forward.1} parent=1 // pred_check
      _
    $region55: #{gru4rec_forward.1} parent=1 // pred_check_branch
      %525 = sbr.rel (0) target = $region57
    $region56: #{gru4rec_forward.1} parent=1 // pred_region
      %s527 = ssub.s32 128, 128
      %528 = vsyncadd [#allocation3], %s527
      %s530 = sshll.u32 [#allocation2], 4
      %s531 = int_to_ptr.vmem [resolvable:$true] %s530
      %533 = dma.vmem_to_hbm [thread:$0]  %s531, 128, %s12, [#allocation3]
    $region57: #{gru4rec_forward.1} parent=1 // pred_fallthru
      _
    // Predicated region
    $region58: #{gru4rec_forward.1} parent=1 // pred_check
      _
    $region59: #{gru4rec_forward.1} parent=1 // pred_check_branch
      %535 = sbr.rel (0) target = $region61
    $region60: #{gru4rec_forward.1} parent=1 // pred_region
      _
    $region61: #{gru4rec_forward.1} parent=1 // pred_fallthru
      _
    // Predicated region
    $region62: #{gru4rec_forward.1} parent=1 // pred_check
      _
    $region63: #{gru4rec_forward.1} parent=1 // pred_check_branch
      %537 = sbr.rel (0) target = $region65
    $region64: #{gru4rec_forward.1} parent=1 // pred_region
      %538 = dma.done [#allocation3], 128
    $region65: #{gru4rec_forward.1} parent=1 // pred_fallthru
      _
    // Predicated region
    $region66: #{gru4rec_forward.1} parent=1 // pred_check
      _
    $region67: #{gru4rec_forward.1} parent=1 // pred_check_branch
      %540 = sbr.rel (0) target = $region69
    $region68: #{gru4rec_forward.1} parent=1 // pred_region
      _
    $region69: #{gru4rec_forward.1} parent=1 // pred_fallthru
      _
    %541 = vsyncpa [#allocation3], 1

</llo_original>
